<compile_context>
chip_gen: v5e
topology: v5e:2x2
jax: 0.10.0
libtpu: 0.0.40
codegen_flags: <defaults>
</compile_context>

<pallas_src>
import functools

import jax
import jax.numpy as jnp
from jax.experimental import pallas as pl
from jax.experimental.pallas import tpu as pltpu


def _round_up(a, m):
    return ((a + m - 1) // m) * m


def _vmem_capacity_bytes():
    """Per-core VMEM capacity (trace-time query), conservative fallback."""
    try:
        info = pltpu.get_tpu_info()
        cap = getattr(info, "vmem_capacity_bytes", None)
        if cap:
            return int(cap)
    except Exception:
        pass
    return 64 << 20  # v7x per-core VMEM; safe lower bound everywhere


def _pick_block_b(b8, target):
    """Largest multiple-of-8 batch tile <= target that divides b8 (avoids any
    batch-pad copy of x) while keeping >=2 (preferably ~4) grid steps so the
    x/out pipeline overlaps and a v7x 2-TC chip gets work on both cores."""
    want = min(target, b8)
    if b8 >= 1024:
        want = min(want, max(256, b8 // 4))   # aim for >= 4 steps
    elif b8 >= 512:
        want = min(want, max(256, b8 // 2))   # at least 2 steps
    want -= want % 8
    want = max(want, 8)
    for bb in range(want, 7, -8):
        if b8 % bb == 0:
            return bb
    return 8


def _highway_kernel(x_ref, w_ref, b_ref, o_ref):
    d = o_ref.shape[1]                               # Dp (multiple of 128 -> free lane slice)
    x = x_ref[...].astype(jnp.float32)               # residual path in f32
    xm = x_ref[...].astype(w_ref.dtype)              # MXU operand (bf16)
    # Split fused GEMM: two (bb, Dp) f32 results instead of one (bb, 2Dp) temp.
    zt = jnp.dot(xm, w_ref[:, :d], preferred_element_type=jnp.float32) + b_ref[:, :d]
    zg = jnp.dot(xm, w_ref[:, d:], preferred_element_type=jnp.float32) + b_ref[:, d:]
    h = jnp.tanh(zt)                                 # transform branch
    g = 0.5 * (jnp.tanh(0.5 * zg) + 1.0)             # sigmoid via tanh identity (1 EUP op)
    o_ref[...] = (x + g * (h - x)).astype(o_ref.dtype)


def prepare_highway_params(wt, bt, wg, bg, *, weight_dtype=jnp.bfloat16):
    """One-time parameter preparation (hoisted out of the forward pass).

    wt/wg must be stored as (in, out) so the kernel computes x @ W
    (i.e. transpose PyTorch nn.Linear's (out, in) layout when porting a checkpoint).
    Returns (w_fused [Dp, 2*Dp] in weight_dtype, b_fused [1, 2*Dp] f32).
    """
    D = wt.shape[0]
    assert wt.shape == (D, D) and wg.shape == (D, D)
    assert bt.shape == (D,) and bg.shape == (D,)
    Dp = _round_up(D, 128)
    pad = Dp - D
    if pad:
        wt = jnp.pad(wt, ((0, pad), (0, pad)))
        wg = jnp.pad(wg, ((0, pad), (0, pad)))
        bt = jnp.pad(bt, (0, pad))
        bg = jnp.pad(bg, (0, pad))
    w = jnp.concatenate([wt, wg], axis=1).astype(weight_dtype)
    b = jnp.concatenate([bt, bg]).reshape(1, 2 * Dp).astype(jnp.float32)
    return w, b


@functools.partial(jax.jit, static_argnames=("block_b", "out_dtype"))
def highway_forward(x, w_fused, b_fused, *, block_b=512, out_dtype=None):
    """Fused highway forward.

    x:       [B, D] activations (f32 or bf16; bf16 halves HBM streaming).
    w_fused: [Dp, 2*Dp] pre-fused [Wt | Wg] (from prepare_highway_params).
    b_fused: [1, 2*Dp]  pre-fused f32 [bt | bg].
    """
    B, D = x.shape
    Dp = w_fused.shape[0]
    assert w_fused.shape == (Dp, 2 * Dp), w_fused.shape
    assert b_fused.shape == (1, 2 * Dp), b_fused.shape
    assert D <= Dp
    out_dtype = jnp.dtype(out_dtype) if out_dtype is not None else x.dtype

    # Feature pad only needed when D is not already a lane multiple (real models: no-op).
    if Dp != D:
        x = jnp.pad(x, ((0, 0), (0, Dp - D)))
    # Minimal batch pad to a sublane multiple; the block size is chosen to divide
    # it, so no further batch padding/copy of x is materialized.
    B8 = _round_up(B, 8)
    if B8 != B:
        x = jnp.pad(x, ((0, B8 - B), (0, 0)))
    bb = _pick_block_b(B8, block_b)
    grid = (B8 // bb,)

    x_bytes = jnp.dtype(x.dtype).itemsize
    o_bytes = jnp.dtype(out_dtype).itemsize
    w_bytes = w_fused.size * w_fused.dtype.itemsize
    bias_bytes = b_fused.size * b_fused.dtype.itemsize

    # VMEM: resident weight/bias (single buffer) + double-buffered x/out tiles
    # + f32 temporaries (split GEMM keeps only ~3 live (bb, Dp) f32 tiles).
    vmem_need = (w_bytes + bias_bytes
                 + 2 * bb * Dp * x_bytes + 2 * bb * Dp * o_bytes
                 + 3 * bb * Dp * 4)
    cap = _vmem_capacity_bytes()
    vmem_limit = int(max(32 << 20, 2 * vmem_need))
    vmem_limit = max(16 << 20, min(vmem_limit, cap - (8 << 20)))
    # TODO(synk): for very large D (resident bf16 [Dp, 2Dp] weight approaching VMEM
    #             capacity, esp. v7x's 64 MiB) add a feature-tile grid axis and
    #             stream double-buffered weight column blocks instead.

    flops = 2 * B8 * Dp * (2 * Dp) + 8 * B8 * Dp
    transcendentals = 2 * B8 * Dp
    bytes_accessed = B8 * Dp * (x_bytes + o_bytes) + w_bytes + bias_bytes

    out = pl.pallas_call(
        _highway_kernel,
        out_shape=jax.ShapeDtypeStruct((B8, Dp), out_dtype),
        grid_spec=pltpu.PrefetchScalarGridSpec(
            num_scalar_prefetch=0,
            grid=grid,
            in_specs=[
                # streamed activation tile (double-buffered by default)
                pl.BlockSpec((bb, Dp), lambda i: (i, 0)),
                # resident fused weight: constant index_map -> single-buffered
                pl.BlockSpec((Dp, 2 * Dp), lambda i: (0, 0),
                             pipeline_mode=pl.Buffered(1)),
                # resident fused bias
                pl.BlockSpec((1, 2 * Dp), lambda i: (0, 0),
                             pipeline_mode=pl.Buffered(1)),
            ],
            out_specs=pl.BlockSpec((bb, Dp), lambda i: (i, 0)),
        ),
        compiler_params=pltpu.CompilerParams(
            dimension_semantics=("parallel",),
            vmem_limit_bytes=int(vmem_limit),
        ),
        cost_estimate=pl.CostEstimate(
            flops=int(flops),
            transcendentals=int(transcendentals),
            bytes_accessed=int(bytes_accessed),
        ),
    )(x, w_fused, b_fused)

    if B8 != B or Dp != D:
        out = out[:B, :D]
    return out


def init_highway_params(key, dim, dtype=jnp.float32):
    """PyTorch-style init: U(-1/sqrt(dim), 1/sqrt(dim)); W stored as (in, out)."""
    k1, k2, k3, k4 = jax.random.split(key, 4)
    bound = 1.0 / (dim ** 0.5)
    wt = jax.random.uniform(k1, (dim, dim), dtype, -bound, bound)
    bt = jax.random.uniform(k2, (dim,), dtype, -bound, bound)
    wg = jax.random.uniform(k3, (dim, dim), dtype, -bound, bound)
    bg = jax.random.uniform(k4, (dim,), dtype, -bound, bound)
    return wt, bt, wg, bg


def highway_reference(x, wt, bt, wg, bg, use_bf16=True):
    """Pure-jnp reference. use_bf16=True mirrors the kernel's precision choices."""
    if use_bf16:
        xm = x.astype(jnp.bfloat16)
        wt = wt.astype(jnp.bfloat16)
        wg = wg.astype(jnp.bfloat16)
    else:
        xm = x
    h = jnp.tanh(jnp.dot(xm, wt, preferred_element_type=jnp.float32) + bt)
    g = jax.nn.sigmoid(jnp.dot(xm, wg, preferred_element_type=jnp.float32) + bg)
    return x + g * (h - x)


if __name__ == "__main__":
    key = jax.random.PRNGKey(0)
    kx1, kp1, kx2 = jax.random.split(key, 3)

    # ---- Case 1: f32 I/O, dim not a multiple of 128 (exercises the pad path) ----
    batch, dim = 512, 96
    x = jax.random.normal(kx1, (batch, dim), jnp.float32)
    wt, bt, wg, bg = init_highway_params(kp1, dim)
    w_fused, b_fused = prepare_highway_params(wt, bt, wg, bg)   # one-time prep

    out = highway_forward(x, w_fused, b_fused)
    out = jax.block_until_ready(out)
    assert out.shape == (batch, dim), out.shape

    ref_matched = highway_reference(x, wt, bt, wg, bg, use_bf16=True)
    assert jnp.allclose(out, ref_matched, atol=1e-4, rtol=1e-4), \
        "mismatch vs matched-precision reference"
    ref_f32 = highway_reference(x, wt, bt, wg, bg, use_bf16=False)
    assert jnp.allclose(out, ref_f32, atol=5e-2, rtol=5e-2), \
        "mismatch vs f32 reference"

    # ---- Case 2: bf16 streaming I/O (bf16 surrounding model), dim multiple of 128 ----
    batch2, dim2 = 640, 256
    x2f = jax.random.normal(kx2, (batch2, dim2), jnp.float32)
    wt2, bt2, wg2, bg2 = init_highway_params(jax.random.PRNGKey(1), dim2)
    w2, b2 = prepare_highway_params(wt2, bt2, wg2, bg2)

    x2 = x2f.astype(jnp.bfloat16)                 # bf16 in -> bf16 out (half the HBM bytes)
    out2 = highway_forward(x2, w2, b2)
    out2 = jax.block_until_ready(out2)
    assert out2.shape == (batch2, dim2) and out2.dtype == jnp.bfloat16

    ref2 = highway_reference(x2.astype(jnp.float32), wt2, bt2, wg2, bg2, use_bf16=True)
    assert jnp.allclose(out2.astype(jnp.float32), ref2, atol=5e-2, rtol=5e-2), \
        "mismatch vs bf16-I/O reference"

    print("KERNEL_OK")
</pallas_src>

<mosaic_0001>
module attributes {stable_mosaic.version = 11 : i64} {
  func.func @_highway_kernel(%arg0: i32, %arg1: memref<256x128xf32, #tpu.memory_space<vmem>>, %arg2: memref<128x256xbf16, #tpu.memory_space<vmem>>, %arg3: memref<1x256xf32, #tpu.memory_space<vmem>>, %arg4: memref<256x128xf32, #tpu.memory_space<vmem>>) attributes {dimension_semantics = [#tpu.dimension_semantics<parallel>], iteration_bounds = array<i64: 2>, scalar_prefetch = 0 : i64, scratch_operands = 0 : i64, tpu.core_type = #tpu.core_type<tc>, window_params = [{transform_indices = @transform_0, window_bounds = array<i64: 256, 128>}, {pipeline_mode = #tpu.pipeline_mode<synchronous>, transform_indices = @transform_1, window_bounds = array<i64: 128, 256>}, {pipeline_mode = #tpu.pipeline_mode<synchronous>, transform_indices = @transform_2, window_bounds = array<i64: 1, 256>}, {transform_indices = @transform_3, window_bounds = array<i64: 256, 128>}]} {
    %c0 = arith.constant 0 : index
    %c0_0 = arith.constant 0 : index
    %0 = vector.load %arg1[%c0, %c0_0] : memref<256x128xf32, #tpu.memory_space<vmem>>, vector<256x128xf32>
    %c0_1 = arith.constant 0 : index
    %c0_2 = arith.constant 0 : index
    %1 = vector.load %arg1[%c0_1, %c0_2] : memref<256x128xf32, #tpu.memory_space<vmem>>, vector<256x128xf32>
    %2 = arith.truncf %1 : vector<256x128xf32> to vector<256x128xbf16>
    %c0_3 = arith.constant 0 : index
    %c0_4 = arith.constant 0 : index
    %3 = vector.load %arg2[%c0_3, %c0_4] : memref<128x256xbf16, #tpu.memory_space<vmem>>, vector<128x128xbf16>
    %cst = arith.constant dense<0.000000e+00> : vector<256x128xf32>
    %4 = tpu.matmul %2, %3, %cst {dimension_numbers = #tpu.dot_dimension_numbers<[1], [0], [0], [1], [0, 0, 1, 1], [], []>} : vector<256x128xbf16>, vector<128x128xbf16>, vector<256x128xf32> -> vector<256x128xf32>
    %c0_5 = arith.constant 0 : index
    %c0_6 = arith.constant 0 : index
    %5 = vector.load %arg3[%c0_5, %c0_6] : memref<1x256xf32, #tpu.memory_space<vmem>>, vector<1x128xf32>
    %6 = vector.broadcast %5 : vector<1x128xf32> to vector<256x128xf32>
    %7 = arith.addf %4, %6 : vector<256x128xf32>
    %c0_7 = arith.constant 0 : index
    %c128 = arith.constant 128 : index
    %8 = vector.load %arg2[%c0_7, %c128] : memref<128x256xbf16, #tpu.memory_space<vmem>>, vector<128x128xbf16>
    %cst_8 = arith.constant dense<0.000000e+00> : vector<256x128xf32>
    %9 = tpu.matmul %2, %8, %cst_8 {dimension_numbers = #tpu.dot_dimension_numbers<[1], [0], [0], [1], [0, 0, 1, 1], [], []>} : vector<256x128xbf16>, vector<128x128xbf16>, vector<256x128xf32> -> vector<256x128xf32>
    %c0_9 = arith.constant 0 : index
    %c128_10 = arith.constant 128 : index
    %10 = vector.load %arg3[%c0_9, %c128_10] : memref<1x256xf32, #tpu.memory_space<vmem>>, vector<1x128xf32>
    %11 = vector.broadcast %10 : vector<1x128xf32> to vector<256x128xf32>
    %12 = arith.addf %9, %11 : vector<256x128xf32>
    %13 = math.tanh %7 : vector<256x128xf32>
    %cst_11 = arith.constant 5.000000e-01 : f32
    %14 = vector.broadcast %cst_11 : f32 to vector<256x128xf32>
    %15 = arith.mulf %14, %12 : vector<256x128xf32>
    %16 = math.tanh %15 : vector<256x128xf32>
    %cst_12 = arith.constant 1.000000e+00 : f32
    %17 = vector.broadcast %cst_12 : f32 to vector<256x128xf32>
    %18 = arith.addf %16, %17 : vector<256x128xf32>
    %cst_13 = arith.constant 5.000000e-01 : f32
    %19 = vector.broadcast %cst_13 : f32 to vector<256x128xf32>
    %20 = arith.mulf %19, %18 : vector<256x128xf32>
    %21 = arith.subf %13, %0 : vector<256x128xf32>
    %22 = arith.mulf %20, %21 : vector<256x128xf32>
    %23 = arith.addf %0, %22 : vector<256x128xf32>
    %c0_14 = arith.constant 0 : index
    %c0_15 = arith.constant 0 : index
    %24 = vector.load %arg4[%c0_14, %c0_15] : memref<256x128xf32, #tpu.memory_space<vmem>>, vector<256x128xf32>
    tpu.vector_store %arg4[%c0_14, %c0_15], %23 {strides = array<i32>} : memref<256x128xf32, #tpu.memory_space<vmem>>, vector<256x128xf32>,
    return
  }
  func.func @transform_0(%arg0: i32) -> (i32, i32) {
    %c0_i32 = arith.constant 0 : i32
    %c0_i32_0 = arith.constant 0 : i32
    return %arg0, %c0_i32 : i32, i32
  }
  func.func @transform_1(%arg0: i32) -> (i32, i32) {
    %c0_i32 = arith.constant 0 : i32
    %c0_i32_0 = arith.constant 0 : i32
    %c0_i32_1 = arith.constant 0 : i32
    return %c0_i32, %c0_i32_0 : i32, i32
  }
  func.func @transform_2(%arg0: i32) -> (i32, i32) {
    %c0_i32 = arith.constant 0 : i32
    %c0_i32_0 = arith.constant 0 : i32
    %c0_i32_1 = arith.constant 0 : i32
    return %c0_i32, %c0_i32_0 : i32, i32
  }
  func.func @transform_3(%arg0: i32) -> (i32, i32) {
    %c0_i32 = arith.constant 0 : i32
    %c0_i32_0 = arith.constant 0 : i32
    return %arg0, %c0_i32 : i32, i32
  }
}

</mosaic_0001>

<llo_original>
// kernel: highway_forward.1
$region0: #{highway_forward.1}
  #allocation0 [shape = 'u32[]', space=smem, size = 0x4, offset = 0x4, fixed_abs, tag = 'smem constant byte address 0x4 - core index']
  #allocation1 [shape = 'u32[72,128]{1,0:T(1,128)}', space=vmem, size = 0x9000, scoped, tag = 'internal scratch']
  %s0 = inlined_call_operand.vmem [shape: f32[512,128], index: 0, kind: input, shape index: {}]
  %s1 = inlined_call_operand.vmem [shape: bf16[128,256], index: 1, kind: input, shape index: {}]
  %s2 = inlined_call_operand.vmem [shape: f32[1,256], index: 2, kind: input, shape index: {}]
  %s3 = inlined_call_operand.vmem [shape: f32[512,128], index: 3, kind: output, shape index: {}]
  %s4 = sld [smem:[#allocation0]]
  $region45: #{highway_forward.1} parent=0
    _
  %s6 = ssub.s32 1, %s4
  %s7 = scalar_select 0, %s6, %s4
  loop: start=0, step=1, limit=4
  $region2: #{highway_forward.1} parent=0 // loop_pre_header
    _
  $region3: #{highway_forward.1} parent=0 // loop_header
    %s9 = sphi 0, %s13
    %p10 = scmp.ge.s32.totalorder %s9, 4
    %s19 = sphi 0, %s21
    %s22 = sphi 0, %s19
    %s23 = sphi 0, %s22
    %s39 = sphi 0, %s23
    %s43 = sphi 0, %s43
    %s45 = sphi 0, %s43
    %s46 = sphi 0, %s45
    %s60 = sphi 0, %s46
    %s64 = sphi 0, %s64
    %s66 = sphi 0, %s64
    %s67 = sphi 0, %s66
    %s81 = sphi 0, %s67
    %s87 = sphi 0, %s89
    %s90 = sphi 0, %s87
    %s91 = sphi 0, %s90
    %s107 = sphi 0, %s91
  $region4: #{highway_forward.1} parent=0 // loop_header_branch
    %12 = sbr.rel (%p10) target = $region8
  $region5: #{highway_forward.1} parent=0 // loop_body
    %s14 = ssub.s32 %s9, 1
    %s15 = ssub.s32 %s9, 2
    %s16 = sadd.s32 %s9, 1
    %s17 = ssub.s32 %s9, %s16
    %p18 = scmp.eq.s32.totalorder %s17, 0
    %s20 = sadd.s32 %s19, 1
    %s21 = scalar_select %p18, %s19, %s20
    %p24 = pneg %p18
    %p25 = scmp.eq.s32.totalorder %s9, 1
    %p26 = por %p24, %p25
    %p27 = scmp.ne.s32.totalorder %s19, %s22
    %p28 = scmp.eq.s32.totalorder %s9, 0
    %p29 = por %p27, %p28
    %p30 = scmp.ne.s32.totalorder %s19, %s22
    %p31 = scmp.eq.s32.totalorder %s14, 1
    %p32 = por %p30, %p31
    %p33 = scmp.ne.s32.totalorder %s22, %s23
    %p34 = scmp.eq.s32.totalorder %s14, 0
    %p35 = por %p33, %p34
    %p36 = scmp.ne.s32.totalorder %s22, %s23
    %p37 = scmp.eq.s32.totalorder %s15, 1
    %p38 = por %p36, %p37
    %p40 = scmp.ne.s32.totalorder %s23, %s39
    %p41 = scmp.eq.s32.totalorder %s15, 0
    %p42 = por %p40, %p41
    %s44 = sadd.s32 %s43, 1
    %p47 = scmp.eq.s32.totalorder %s9, 1
    %p48 = scmp.ne.s32.totalorder %s43, %s45
    %p49 = scmp.eq.s32.totalorder %s9, 0
    %p50 = por %p48, %p49
    %p51 = scmp.ne.s32.totalorder %s43, %s45
    %p52 = scmp.eq.s32.totalorder %s14, 1
    %p53 = por %p51, %p52
    %p54 = scmp.ne.s32.totalorder %s45, %s46
    %p55 = scmp.eq.s32.totalorder %s14, 0
    %p56 = por %p54, %p55
    %p57 = scmp.ne.s32.totalorder %s45, %s46
    %p58 = scmp.eq.s32.totalorder %s15, 1
    %p59 = por %p57, %p58
    %p61 = scmp.ne.s32.totalorder %s46, %s60
    %p62 = scmp.eq.s32.totalorder %s15, 0
    %p63 = por %p61, %p62
    %s65 = sadd.s32 %s64, 1
    %p68 = scmp.eq.s32.totalorder %s9, 1
    %p69 = scmp.ne.s32.totalorder %s64, %s66
    %p70 = scmp.eq.s32.totalorder %s9, 0
    %p71 = por %p69, %p70
    %p72 = scmp.ne.s32.totalorder %s64, %s66
    %p73 = scmp.eq.s32.totalorder %s14, 1
    %p74 = por %p72, %p73
    %p75 = scmp.ne.s32.totalorder %s66, %s67
    %p76 = scmp.eq.s32.totalorder %s14, 0
    %p77 = por %p75, %p76
    %p78 = scmp.ne.s32.totalorder %s66, %s67
    %p79 = scmp.eq.s32.totalorder %s15, 1
    %p80 = por %p78, %p79
    %p82 = scmp.ne.s32.totalorder %s67, %s81
    %p83 = scmp.eq.s32.totalorder %s15, 0
    %p84 = por %p82, %p83
    %s85 = ssub.s32 %s9, %s16
    %p86 = scmp.eq.s32.totalorder %s85, 0
    %s88 = sadd.s32 %s87, 1
    %s89 = scalar_select %p86, %s87, %s88
    %p92 = pneg %p86
    %p93 = scmp.eq.s32.totalorder %s9, 1
    %p94 = por %p92, %p93
    %p95 = scmp.ne.s32.totalorder %s87, %s90
    %p96 = scmp.eq.s32.totalorder %s9, 0
    %p97 = por %p95, %p96
    %p98 = scmp.ne.s32.totalorder %s87, %s90
    %p99 = scmp.eq.s32.totalorder %s14, 1
    %p100 = por %p98, %p99
    %p101 = scmp.ne.s32.totalorder %s90, %s91
    %p102 = scmp.eq.s32.totalorder %s14, 0
    %p103 = por %p101, %p102
    %p104 = scmp.ne.s32.totalorder %s90, %s91
    %p105 = scmp.eq.s32.totalorder %s15, 1
    %p106 = por %p104, %p105
    %p108 = scmp.ne.s32.totalorder %s91, %s107
    %p109 = scmp.eq.s32.totalorder %s15, 0
    %p110 = por %p108, %p109
    %p111 = scmp.le.s32.totalorder 1, %s9
    %p112 = scmp.lt.s32.totalorder %s9, 3
    %p113 = pnand %p111, %p112
    %p114 = pneg %p113
    // Predicated region
    $region9: #{highway_forward.1} parent=5 // pred_check
      _
    $region10: #{highway_forward.1} parent=5 // pred_check_branch
      %116 = sbr.rel (%p113) target = $region12
    $region11: #{highway_forward.1} parent=5 // pred_region
      %s117 = ssub.s32 %s9, 1
      // Predicated region
      $region13: #{highway_forward.1} parent=11 // pred_check
        %p118 = pneg %p56
      $region14: #{highway_forward.1} parent=11 // pred_check_branch
        %120 = sbr.rel (%p118) target = $region16
      $region15: #{highway_forward.1} parent=11 // pred_region
        _
      $region16: #{highway_forward.1} parent=11 // pred_fallthru
        _
      // Predicated region
      $region17: #{highway_forward.1} parent=11 // pred_check
        %p121 = pneg %p77
      $region18: #{highway_forward.1} parent=11 // pred_check_branch
        %123 = sbr.rel (%p121) target = $region20
      $region19: #{highway_forward.1} parent=11 // pred_region
        _
      $region20: #{highway_forward.1} parent=11 // pred_fallthru
        _
    $region12: #{highway_forward.1} parent=5 // pred_fallthru
      _
    %p124 = scmp.lt.s32.totalorder %s9, 2
    // Predicated region
    $region21: #{highway_forward.1} parent=5 // pred_check
      %p125 = pneg %p124
    $region22: #{highway_forward.1} parent=5 // pred_check_branch
      %127 = sbr.rel (%p125) target = $region24
    $region23: #{highway_forward.1} parent=5 // pred_region
      // Predicated region
      $region25: #{highway_forward.1} parent=23 // pred_check
        %p128 = pneg %p29
      $region26: #{highway_forward.1} parent=23 // pred_check_branch
        %130 = sbr.rel (%p128) target = $region28
      $region27: #{highway_forward.1} parent=23 // pred_region
        %s131 = smul.u32 32, %s9
        %p132 = scmp.lt.s32.totalorder %s131, 63
        %s133 = scalar_select %p132, %s131, 63
        %s134 = smul.addr %s133, 8
        %s135 = scalar_lea.vmem %s0, %s134
        %s136 = smul.u32 32, %s9
      $region28: #{highway_forward.1} parent=23 // pred_fallthru
        _
    $region24: #{highway_forward.1} parent=5 // pred_fallthru
      _
    %p137 = scmp.le.s32.totalorder 1, %s9
    %p138 = scmp.lt.s32.totalorder %s9, 3
    %p139 = pnand %p137, %p138
    %p140 = pneg %p139
    // Predicated region
    $region29: #{highway_forward.1} parent=5 // pred_check
      _
    $region30: #{highway_forward.1} parent=5 // pred_check_branch
      %142 = sbr.rel (%p139) target = $region32
    $region31: #{highway_forward.1} parent=5 // pred_region
      %s143 = ssub.s32 %s9, 1
      %s144 = smul.u32 32, %s14
      %p145 = scmp.lt.s32.totalorder %s144, 63
      %s146 = scalar_select %p145, %s144, 63
      %s147 = smul.addr %s146, 8
      %s148 = scalar_lea.vmem %s0, %s147
      %p149 = pneg %p35
      %p150 = pneg %p32
      %p151 = pneg %p56
      %p152 = pneg %p53
      %p153 = pneg %p77
      %p154 = pneg %p74
      %p155 = pneg %p103
      %p156 = pneg %p100
      %s157 = smul.u32 32, %s14
      %p158 = scmp.lt.s32.totalorder %s157, 63
      %s159 = scalar_select %p158, %s157, 63
      %s160 = smul.addr %s159, 8
      %s161 = scalar_lea.vmem %s3, %s160
      %s162 = smul.u32 32, %s14
      %p163 = scmp.lt.s32.totalorder %s162, 63
      %s164 = scalar_select %p163, %s162, 63
      %s165 = smul.addr %s164, 8
      %s166 = scalar_lea.vmem %s0, %s165
      %s167 = smul.u32 32, %s14
      %s168 = smul.u32 32, %s14
      %p169 = scmp.lt.s32.totalorder %s168, 63
      %s170 = scalar_select %p169, %s168, 63
      %s171 = smul.addr %s170, 8
      %s172 = scalar_lea.vmem %s3, %s171
      %s173 = smul.u32 32, %s14
      %v174 = vld [vmem:[%s166] sm:$0xff]
      %v175 = vld [vmem:[%s166 + $0x8] sm:$0xff]
      %v176 = vld [vmem:[%s166 + $0x10] sm:$0xff]
      %v177 = vld [vmem:[%s166 + $0x18] sm:$0xff]
      %v178 = vld [vmem:[%s166 + $0x20] sm:$0xff]
      %v179 = vld [vmem:[%s166 + $0x28] sm:$0xff]
      %v180 = vld [vmem:[%s166 + $0x30] sm:$0xff]
      %v181 = vld [vmem:[%s166 + $0x38] sm:$0xff]
      %v182 = vld [vmem:[%s166 + $0x40] sm:$0xff]
      %v183 = vld [vmem:[%s166 + $0x48] sm:$0xff]
      %v184 = vld [vmem:[%s166 + $0x50] sm:$0xff]
      %v185 = vld [vmem:[%s166 + $0x58] sm:$0xff]
      %v186 = vld [vmem:[%s166 + $0x60] sm:$0xff]
      %v187 = vld [vmem:[%s166 + $0x68] sm:$0xff]
      %v188 = vld [vmem:[%s166 + $0x70] sm:$0xff]
      %v189 = vld [vmem:[%s166 + $0x78] sm:$0xff]
      %v190 = vld [vmem:[%s166 + $0x80] sm:$0xff]
      %v191 = vld [vmem:[%s166 + $0x88] sm:$0xff]
      %v192 = vld [vmem:[%s166 + $0x90] sm:$0xff]
      %v193 = vld [vmem:[%s166 + $0x98] sm:$0xff]
      %v194 = vld [vmem:[%s166 + $0xa0] sm:$0xff]
      %v195 = vld [vmem:[%s166 + $0xa8] sm:$0xff]
      %v196 = vld [vmem:[%s166 + $0xb0] sm:$0xff]
      %v197 = vld [vmem:[%s166 + $0xb8] sm:$0xff]
      %v198 = vld [vmem:[%s166 + $0xc0] sm:$0xff]
      %v199 = vld [vmem:[%s166 + $0xc8] sm:$0xff]
      %v200 = vld [vmem:[%s166 + $0xd0] sm:$0xff]
      %v201 = vld [vmem:[%s166 + $0xd8] sm:$0xff]
      %v202 = vld [vmem:[%s166 + $0xe0] sm:$0xff]
      %v203 = vld [vmem:[%s166 + $0xe8] sm:$0xff]
      %v204 = vld [vmem:[%s166 + $0xf0] sm:$0xff]
      %v205 = vld [vmem:[%s166 + $0xf8] sm:$0xff]
      %v206 = vpack.c.bf16 %v175, %v174
      %v207 = vpack.c.bf16 %v177, %v176
      %v208 = vpack.c.bf16 %v179, %v178
      %v209 = vpack.c.bf16 %v181, %v180
      %v210 = vpack.c.bf16 %v183, %v182
      %v211 = vpack.c.bf16 %v185, %v184
      %v212 = vpack.c.bf16 %v187, %v186
      %v213 = vpack.c.bf16 %v189, %v188
      %v214 = vpack.c.bf16 %v191, %v190
      %v215 = vpack.c.bf16 %v193, %v192
      %v216 = vpack.c.bf16 %v195, %v194
      %v217 = vpack.c.bf16 %v197, %v196
      %v218 = vpack.c.bf16 %v199, %v198
      %v219 = vpack.c.bf16 %v201, %v200
      %v220 = vpack.c.bf16 %v203, %v202
      %v221 = vpack.c.bf16 %v205, %v204
      %v222 = vld [vmem:[%s1] sm:$0xf]
      %v223 = vld [vmem:[%s1 + $0x8] sm:$0xf]
      %v224 = vld [vmem:[%s1 + $0x10] sm:$0xf]
      %v225 = vld [vmem:[%s1 + $0x18] sm:$0xf]
      %v226 = vld [vmem:[%s1 + $0x20] sm:$0xf]
      %v227 = vld [vmem:[%s1 + $0x28] sm:$0xf]
      %v228 = vld [vmem:[%s1 + $0x30] sm:$0xf]
      %v229 = vld [vmem:[%s1 + $0x38] sm:$0xf]
      %v230 = vld [vmem:[%s1 + $0x40] sm:$0xf]
      %v231 = vld [vmem:[%s1 + $0x48] sm:$0xf]
      %v232 = vld [vmem:[%s1 + $0x50] sm:$0xf]
      %v233 = vld [vmem:[%s1 + $0x58] sm:$0xf]
      %v234 = vld [vmem:[%s1 + $0x60] sm:$0xf]
      %v235 = vld [vmem:[%s1 + $0x68] sm:$0xf]
      %v236 = vld [vmem:[%s1 + $0x70] sm:$0xf]
      %v237 = vld [vmem:[%s1 + $0x78] sm:$0xf]
      %v238 = vld [vmem:[%s2] sm:$0x1]
      %v240 = vperm.slane %v238, 0
      %v258 = vunpack.c.l.b16 %v222
      %v259 = vunpack.c.l.b16 %v223
      %v260 = vunpack.c.l.b16 %v224
      %v261 = vunpack.c.l.b16 %v225
      %v262 = vunpack.c.l.b16 %v226
      %v263 = vunpack.c.l.b16 %v227
      %v264 = vunpack.c.l.b16 %v228
      %v265 = vunpack.c.l.b16 %v229
      %v266 = vunpack.c.l.b16 %v230
      %v267 = vunpack.c.l.b16 %v231
      %v268 = vunpack.c.l.b16 %v232
      %v269 = vunpack.c.l.b16 %v233
      %v270 = vunpack.c.l.b16 %v234
      %v271 = vunpack.c.l.b16 %v235
      %v272 = vunpack.c.l.b16 %v236
      %v273 = vunpack.c.l.b16 %v237
      %v274 = vpack.c.b16 %v259, %v258
      %v275 = vpack.c.b16 %v261, %v260
      %v276 = vpack.c.b16 %v263, %v262
      %v277 = vpack.c.b16 %v265, %v264
      %v278 = vpack.c.b16 %v267, %v266
      %v279 = vpack.c.b16 %v269, %v268
      %v280 = vpack.c.b16 %v271, %v270
      %v281 = vpack.c.b16 %v273, %v272
      %290 = vmatpush.bf16.msra.mxu0 %v281
      %291 = vmatpush.bf16.msra.mxu0 %v280
      %292 = vmatpush.bf16.msra.mxu0 %v279
      %293 = vmatpush.bf16.msra.mxu0 %v278
      %294 = vmatpush.bf16.msra.mxu0 %v277
      %295 = vmatpush.bf16.msra.mxu0 %v276
      %296 = vmatpush.bf16.msra.mxu0 %v275
      %297 = vmatpush.bf16.msra.mxu0 %v274
      %298 = vmatmul.bf16.gmra.mxu0 %v206
      %v299 = vpop.f32.mrf.mxu0
      %v300 = vadd.f32 %v240, %v299
      %v301 = vpop.f32.mrf.mxu0
      %v302 = vadd.f32 %v240, %v301
      %303 = vmatmul.bf16.gmra.mxu0 %v207
      %v304 = vpop.f32.mrf.mxu0
      %v305 = vadd.f32 %v240, %v304
      %v306 = vpop.f32.mrf.mxu0
      %v307 = vadd.f32 %v240, %v306
      %308 = vmatmul.bf16.gmra.mxu0 %v208
      %v309 = vpop.f32.mrf.mxu0
      %v310 = vadd.f32 %v240, %v309
      %v311 = vpop.f32.mrf.mxu0
      %v312 = vadd.f32 %v240, %v311
      %313 = vmatmul.bf16.gmra.mxu0 %v209
      %v314 = vpop.f32.mrf.mxu0
      %v315 = vadd.f32 %v240, %v314
      %v316 = vpop.f32.mrf.mxu0
      %v317 = vadd.f32 %v240, %v316
      %318 = vmatmul.bf16.gmra.mxu0 %v210
      %v319 = vpop.f32.mrf.mxu0
      %v320 = vadd.f32 %v240, %v319
      %v321 = vpop.f32.mrf.mxu0
      %v322 = vadd.f32 %v240, %v321
      %323 = vmatmul.bf16.gmra.mxu0 %v211
      %v324 = vpop.f32.mrf.mxu0
      %v325 = vadd.f32 %v240, %v324
      %v326 = vpop.f32.mrf.mxu0
      %v327 = vadd.f32 %v240, %v326
      %328 = vmatmul.bf16.gmra.mxu0 %v212
      %v329 = vpop.f32.mrf.mxu0
      %v330 = vadd.f32 %v240, %v329
      %v331 = vpop.f32.mrf.mxu0
      %v332 = vadd.f32 %v240, %v331
      %333 = vmatmul.bf16.gmra.mxu0 %v213
      %v334 = vpop.f32.mrf.mxu0
      %v335 = vadd.f32 %v240, %v334
      %v336 = vpop.f32.mrf.mxu0
      %v337 = vadd.f32 %v240, %v336
      %338 = vmatmul.bf16.gmra.mxu0 %v214
      %v339 = vpop.f32.mrf.mxu0
      %v340 = vadd.f32 %v240, %v339
      %v341 = vpop.f32.mrf.mxu0
      %v342 = vadd.f32 %v240, %v341
      %343 = vmatmul.bf16.gmra.mxu0 %v215
      %v344 = vpop.f32.mrf.mxu0
      %v345 = vadd.f32 %v240, %v344
      %v346 = vpop.f32.mrf.mxu0
      %v347 = vadd.f32 %v240, %v346
      %348 = vmatmul.bf16.gmra.mxu0 %v216
      %v349 = vpop.f32.mrf.mxu0
      %v350 = vadd.f32 %v240, %v349
      %v351 = vpop.f32.mrf.mxu0
      %v352 = vadd.f32 %v240, %v351
      %353 = vmatmul.bf16.gmra.mxu0 %v217
      %v354 = vpop.f32.mrf.mxu0
      %v355 = vadd.f32 %v240, %v354
      %v356 = vpop.f32.mrf.mxu0
      %v357 = vadd.f32 %v240, %v356
      %358 = vmatmul.bf16.gmra.mxu0 %v218
      %v359 = vpop.f32.mrf.mxu0
      %v360 = vadd.f32 %v240, %v359
      %v361 = vpop.f32.mrf.mxu0
      %v362 = vadd.f32 %v240, %v361
      %363 = vmatmul.bf16.gmra.mxu0 %v219
      %v364 = vpop.f32.mrf.mxu0
      %v365 = vadd.f32 %v240, %v364
      %v366 = vpop.f32.mrf.mxu0
      %v367 = vadd.f32 %v240, %v366
      %368 = vmatmul.bf16.gmra.mxu0 %v220
      %v369 = vpop.f32.mrf.mxu0
      %v370 = vadd.f32 %v240, %v369
      %v371 = vpop.f32.mrf.mxu0
      %v372 = vadd.f32 %v240, %v371
      %373 = vmatmul.bf16.gmra.mxu0 %v221
      %v374 = vpop.f32.mrf.mxu0
      %v375 = vadd.f32 %v240, %v374
      %v376 = vpop.f32.mrf.mxu0
      %v377 = vadd.f32 %v240, %v376
      %378 = vdwg.mxu0
      %v379 = vld [vmem:[%s1 + $0x4] sm:$0xf]
      %v380 = vld [vmem:[%s1 + $0xc] sm:$0xf]
      %v381 = vld [vmem:[%s1 + $0x14] sm:$0xf]
      %v382 = vld [vmem:[%s1 + $0x1c] sm:$0xf]
      %v383 = vld [vmem:[%s1 + $0x24] sm:$0xf]
      %v384 = vld [vmem:[%s1 + $0x2c] sm:$0xf]
      %v385 = vld [vmem:[%s1 + $0x34] sm:$0xf]
      %v386 = vld [vmem:[%s1 + $0x3c] sm:$0xf]
      %v387 = vld [vmem:[%s1 + $0x44] sm:$0xf]
      %v388 = vld [vmem:[%s1 + $0x4c] sm:$0xf]
      %v389 = vld [vmem:[%s1 + $0x54] sm:$0xf]
      %v390 = vld [vmem:[%s1 + $0x5c] sm:$0xf]
      %v391 = vld [vmem:[%s1 + $0x64] sm:$0xf]
      %v392 = vld [vmem:[%s1 + $0x6c] sm:$0xf]
      %v393 = vld [vmem:[%s1 + $0x74] sm:$0xf]
      %v394 = vld [vmem:[%s1 + $0x7c] sm:$0xf]
      %v395 = vld [vmem:[%s2 + $0x1] sm:$0x1]
      %v397 = vperm.slane %v395, 0
      %v415 = vunpack.c.l.b16 %v379
      %v416 = vunpack.c.l.b16 %v380
      %v417 = vunpack.c.l.b16 %v381
      %v418 = vunpack.c.l.b16 %v382
      %v419 = vunpack.c.l.b16 %v383
      %v420 = vunpack.c.l.b16 %v384
      %v421 = vunpack.c.l.b16 %v385
      %v422 = vunpack.c.l.b16 %v386
      %v423 = vunpack.c.l.b16 %v387
      %v424 = vunpack.c.l.b16 %v388
      %v425 = vunpack.c.l.b16 %v389
      %v426 = vunpack.c.l.b16 %v390
      %v427 = vunpack.c.l.b16 %v391
      %v428 = vunpack.c.l.b16 %v392
      %v429 = vunpack.c.l.b16 %v393
      %v430 = vunpack.c.l.b16 %v394
      %v431 = vpack.c.b16 %v416, %v415
      %v432 = vpack.c.b16 %v418, %v417
      %v433 = vpack.c.b16 %v420, %v419
      %v434 = vpack.c.b16 %v422, %v421
      %v435 = vpack.c.b16 %v424, %v423
      %v436 = vpack.c.b16 %v426, %v425
      %v437 = vpack.c.b16 %v428, %v427
      %v438 = vpack.c.b16 %v430, %v429
      %447 = vmatpush.bf16.msra.mxu0 %v438
      %448 = vmatpush.bf16.msra.mxu0 %v437
      %449 = vmatpush.bf16.msra.mxu0 %v436
      %450 = vmatpush.bf16.msra.mxu0 %v435
      %451 = vmatpush.bf16.msra.mxu0 %v434
      %452 = vmatpush.bf16.msra.mxu0 %v433
      %453 = vmatpush.bf16.msra.mxu0 %v432
      %454 = vmatpush.bf16.msra.mxu0 %v431
      %455 = vmatmul.bf16.gmra.mxu0 %v206
      %v456 = vpop.f32.mrf.mxu0
      %v457 = vadd.f32 %v397, %v456
      %v458 = vpop.f32.mrf.mxu0
      %v459 = vadd.f32 %v397, %v458
      %460 = vmatmul.bf16.gmra.mxu0 %v207
      %v461 = vpop.f32.mrf.mxu0
      %v462 = vadd.f32 %v397, %v461
      %v463 = vpop.f32.mrf.mxu0
      %v464 = vadd.f32 %v397, %v463
      %465 = vmatmul.bf16.gmra.mxu0 %v208
      %v466 = vpop.f32.mrf.mxu0
      %v467 = vadd.f32 %v397, %v466
      %v468 = vpop.f32.mrf.mxu0
      %v469 = vadd.f32 %v397, %v468
      %470 = vmatmul.bf16.gmra.mxu0 %v209
      %v471 = vpop.f32.mrf.mxu0
      %v472 = vadd.f32 %v397, %v471
      %v473 = vpop.f32.mrf.mxu0
      %v474 = vadd.f32 %v397, %v473
      %475 = vmatmul.bf16.gmra.mxu0 %v210
      %v476 = vpop.f32.mrf.mxu0
      %v477 = vadd.f32 %v397, %v476
      %v478 = vpop.f32.mrf.mxu0
      %v479 = vadd.f32 %v397, %v478
      %480 = vmatmul.bf16.gmra.mxu0 %v211
      %v481 = vpop.f32.mrf.mxu0
      %v482 = vadd.f32 %v397, %v481
      %v483 = vpop.f32.mrf.mxu0
      %v484 = vadd.f32 %v397, %v483
      %485 = vmatmul.bf16.gmra.mxu0 %v212
      %v486 = vpop.f32.mrf.mxu0
      %v487 = vadd.f32 %v397, %v486
      %v488 = vpop.f32.mrf.mxu0
      %v489 = vadd.f32 %v397, %v488
      %490 = vmatmul.bf16.gmra.mxu0 %v213
      %v491 = vpop.f32.mrf.mxu0
      %v492 = vadd.f32 %v397, %v491
      %v493 = vpop.f32.mrf.mxu0
      %v494 = vadd.f32 %v397, %v493
      %495 = vmatmul.bf16.gmra.mxu0 %v214
      %v496 = vpop.f32.mrf.mxu0
      %v497 = vadd.f32 %v397, %v496
      %v498 = vpop.f32.mrf.mxu0
      %v499 = vadd.f32 %v397, %v498
      %500 = vmatmul.bf16.gmra.mxu0 %v215
      %v501 = vpop.f32.mrf.mxu0
      %v502 = vadd.f32 %v397, %v501
      %v503 = vpop.f32.mrf.mxu0
      %v504 = vadd.f32 %v397, %v503
      %505 = vmatmul.bf16.gmra.mxu0 %v216
      %v506 = vpop.f32.mrf.mxu0
      %v507 = vadd.f32 %v397, %v506
      %v508 = vpop.f32.mrf.mxu0
      %v509 = vadd.f32 %v397, %v508
      %510 = vmatmul.bf16.gmra.mxu0 %v217
      %v511 = vpop.f32.mrf.mxu0
      %v512 = vadd.f32 %v397, %v511
      %v513 = vpop.f32.mrf.mxu0
      %v514 = vadd.f32 %v397, %v513
      %515 = vmatmul.bf16.gmra.mxu0 %v218
      %v516 = vpop.f32.mrf.mxu0
      %v517 = vadd.f32 %v397, %v516
      %v518 = vpop.f32.mrf.mxu0
      %v519 = vadd.f32 %v397, %v518
      %520 = vmatmul.bf16.gmra.mxu0 %v219
      %v521 = vpop.f32.mrf.mxu0
      %v522 = vadd.f32 %v397, %v521
      %v523 = vpop.f32.mrf.mxu0
      %v524 = vadd.f32 %v397, %v523
      %525 = vmatmul.bf16.gmra.mxu0 %v220
      %v526 = vpop.f32.mrf.mxu0
      %v527 = vadd.f32 %v397, %v526
      %v528 = vpop.f32.mrf.mxu0
      %v529 = vadd.f32 %v397, %v528
      %530 = vmatmul.bf16.gmra.mxu0 %v221
      %v531 = vpop.f32.mrf.mxu0
      %v532 = vadd.f32 %v397, %v531
      %v533 = vpop.f32.mrf.mxu0
      %v534 = vadd.f32 %v397, %v533
      %535 = vdwg.mxu0
      %v536 = vtanh.pop %v300
      %v537 = vtanh.pop %v302
      %v538 = vtanh.pop %v305
      %v539 = vtanh.pop %v307
      %v540 = vtanh.pop %v310
      %v541 = vtanh.pop %v312
      %v542 = vtanh.pop %v315
      %v543 = vtanh.pop %v317
      %v544 = vtanh.pop %v320
      %v545 = vtanh.pop %v322
      %v546 = vtanh.pop %v325
      %v547 = vtanh.pop %v327
      %v548 = vtanh.pop %v330
      %v549 = vtanh.pop %v332
      %v550 = vtanh.pop %v335
      %v551 = vtanh.pop %v337
      %v552 = vtanh.pop %v340
      %v553 = vtanh.pop %v342
      %v554 = vtanh.pop %v345
      %v555 = vtanh.pop %v347
      %v556 = vtanh.pop %v350
      %v557 = vtanh.pop %v352
      %v558 = vtanh.pop %v355
      %v559 = vtanh.pop %v357
      %v560 = vtanh.pop %v360
      %v561 = vtanh.pop %v362
      %v562 = vtanh.pop %v365
      %v563 = vtanh.pop %v367
      %v564 = vtanh.pop %v370
      %v565 = vtanh.pop %v372
      %v566 = vtanh.pop %v375
      %v567 = vtanh.pop %v377
      %v568 = vmul.f32 %v457, 0.5
      %v569 = vmul.f32 %v459, 0.5
      %v570 = vmul.f32 %v462, 0.5
      %v571 = vmul.f32 %v464, 0.5
      %v572 = vmul.f32 %v467, 0.5
      %v573 = vmul.f32 %v469, 0.5
      %v574 = vmul.f32 %v472, 0.5
      %v575 = vmul.f32 %v474, 0.5
      %v576 = vmul.f32 %v477, 0.5
      %v577 = vmul.f32 %v479, 0.5
      %v578 = vmul.f32 %v482, 0.5
      %v579 = vmul.f32 %v484, 0.5
      %v580 = vmul.f32 %v487, 0.5
      %v581 = vmul.f32 %v489, 0.5
      %v582 = vmul.f32 %v492, 0.5
      %v583 = vmul.f32 %v494, 0.5
      %v584 = vmul.f32 %v497, 0.5
      %v585 = vmul.f32 %v499, 0.5
      %v586 = vmul.f32 %v502, 0.5
      %v587 = vmul.f32 %v504, 0.5
      %v588 = vmul.f32 %v507, 0.5
      %v589 = vmul.f32 %v509, 0.5
      %v590 = vmul.f32 %v512, 0.5
      %v591 = vmul.f32 %v514, 0.5
      %v592 = vmul.f32 %v517, 0.5
      %v593 = vmul.f32 %v519, 0.5
      %v594 = vmul.f32 %v522, 0.5
      %v595 = vmul.f32 %v524, 0.5
      %v596 = vmul.f32 %v527, 0.5
      %v597 = vmul.f32 %v529, 0.5
      %v598 = vmul.f32 %v532, 0.5
      %v599 = vmul.f32 %v534, 0.5
      %v600 = vtanh.pop %v568
      %v601 = vtanh.pop %v569
      %v602 = vtanh.pop %v570
      %v603 = vtanh.pop %v571
      %v604 = vtanh.pop %v572
      %v605 = vtanh.pop %v573
      %v606 = vtanh.pop %v574
      %v607 = vtanh.pop %v575
      %v608 = vtanh.pop %v576
      %v609 = vtanh.pop %v577
      %v610 = vtanh.pop %v578
      %v611 = vtanh.pop %v579
      %v612 = vtanh.pop %v580
      %v613 = vtanh.pop %v581
      %v614 = vtanh.pop %v582
      %v615 = vtanh.pop %v583
      %v616 = vtanh.pop %v584
      %v617 = vtanh.pop %v585
      %v618 = vtanh.pop %v586
      %v619 = vtanh.pop %v587
      %v620 = vtanh.pop %v588
      %v621 = vtanh.pop %v589
      %v622 = vtanh.pop %v590
      %v623 = vtanh.pop %v591
      %v624 = vtanh.pop %v592
      %v625 = vtanh.pop %v593
      %v626 = vtanh.pop %v594
      %v627 = vtanh.pop %v595
      %v628 = vtanh.pop %v596
      %v629 = vtanh.pop %v597
      %v630 = vtanh.pop %v598
      %v631 = vtanh.pop %v599
      %v632 = vadd.f32 %v600, 1.0
      %v633 = vadd.f32 %v601, 1.0
      %v634 = vadd.f32 %v602, 1.0
      %v635 = vadd.f32 %v603, 1.0
      %v636 = vadd.f32 %v604, 1.0
      %v637 = vadd.f32 %v605, 1.0
      %v638 = vadd.f32 %v606, 1.0
      %v639 = vadd.f32 %v607, 1.0
      %v640 = vadd.f32 %v608, 1.0
      %v641 = vadd.f32 %v609, 1.0
      %v642 = vadd.f32 %v610, 1.0
      %v643 = vadd.f32 %v611, 1.0
      %v644 = vadd.f32 %v612, 1.0
      %v645 = vadd.f32 %v613, 1.0
      %v646 = vadd.f32 %v614, 1.0
      %v647 = vadd.f32 %v615, 1.0
      %v648 = vadd.f32 %v616, 1.0
      %v649 = vadd.f32 %v617, 1.0
      %v650 = vadd.f32 %v618, 1.0
      %v651 = vadd.f32 %v619, 1.0
      %v652 = vadd.f32 %v620, 1.0
      %v653 = vadd.f32 %v621, 1.0
      %v654 = vadd.f32 %v622, 1.0
      %v655 = vadd.f32 %v623, 1.0
      %v656 = vadd.f32 %v624, 1.0
      %v657 = vadd.f32 %v625, 1.0
      %v658 = vadd.f32 %v626, 1.0
      %v659 = vadd.f32 %v627, 1.0
      %v660 = vadd.f32 %v628, 1.0
      %v661 = vadd.f32 %v629, 1.0
      %v662 = vadd.f32 %v630, 1.0
      %v663 = vadd.f32 %v631, 1.0
      %v664 = vmul.f32 %v632, 0.5
      %v665 = vmul.f32 %v633, 0.5
      %v666 = vmul.f32 %v634, 0.5
      %v667 = vmul.f32 %v635, 0.5
      %v668 = vmul.f32 %v636, 0.5
      %v669 = vmul.f32 %v637, 0.5
      %v670 = vmul.f32 %v638, 0.5
      %v671 = vmul.f32 %v639, 0.5
      %v672 = vmul.f32 %v640, 0.5
      %v673 = vmul.f32 %v641, 0.5
      %v674 = vmul.f32 %v642, 0.5
      %v675 = vmul.f32 %v643, 0.5
      %v676 = vmul.f32 %v644, 0.5
      %v677 = vmul.f32 %v645, 0.5
      %v678 = vmul.f32 %v646, 0.5
      %v679 = vmul.f32 %v647, 0.5
      %v680 = vmul.f32 %v648, 0.5
      %v681 = vmul.f32 %v649, 0.5
      %v682 = vmul.f32 %v650, 0.5
      %v683 = vmul.f32 %v651, 0.5
      %v684 = vmul.f32 %v652, 0.5
      %v685 = vmul.f32 %v653, 0.5
      %v686 = vmul.f32 %v654, 0.5
      %v687 = vmul.f32 %v655, 0.5
      %v688 = vmul.f32 %v656, 0.5
      %v689 = vmul.f32 %v657, 0.5
      %v690 = vmul.f32 %v658, 0.5
      %v691 = vmul.f32 %v659, 0.5
      %v692 = vmul.f32 %v660, 0.5
      %v693 = vmul.f32 %v661, 0.5
      %v694 = vmul.f32 %v662, 0.5
      %v695 = vmul.f32 %v663, 0.5
      %v696 = vsub.f32 %v536, %v174
      %v697 = vsub.f32 %v537, %v175
      %v698 = vsub.f32 %v538, %v176
      %v699 = vsub.f32 %v539, %v177
      %v700 = vsub.f32 %v540, %v178
      %v701 = vsub.f32 %v541, %v179
      %v702 = vsub.f32 %v542, %v180
      %v703 = vsub.f32 %v543, %v181
      %v704 = vsub.f32 %v544, %v182
      %v705 = vsub.f32 %v545, %v183
      %v706 = vsub.f32 %v546, %v184
      %v707 = vsub.f32 %v547, %v185
      %v708 = vsub.f32 %v548, %v186
      %v709 = vsub.f32 %v549, %v187
      %v710 = vsub.f32 %v550, %v188
      %v711 = vsub.f32 %v551, %v189
      %v712 = vsub.f32 %v552, %v190
      %v713 = vsub.f32 %v553, %v191
      %v714 = vsub.f32 %v554, %v192
      %v715 = vsub.f32 %v555, %v193
      %v716 = vsub.f32 %v556, %v194
      %v717 = vsub.f32 %v557, %v195
      %v718 = vsub.f32 %v558, %v196
      %v719 = vsub.f32 %v559, %v197
      %v720 = vsub.f32 %v560, %v198
      %v721 = vsub.f32 %v561, %v199
      %v722 = vsub.f32 %v562, %v200
      %v723 = vsub.f32 %v563, %v201
      %v724 = vsub.f32 %v564, %v202
      %v725 = vsub.f32 %v565, %v203
      %v726 = vsub.f32 %v566, %v204
      %v727 = vsub.f32 %v567, %v205
      %v728 = vmul.f32 %v664, %v696
      %v729 = vmul.f32 %v665, %v697
      %v730 = vmul.f32 %v666, %v698
      %v731 = vmul.f32 %v667, %v699
      %v732 = vmul.f32 %v668, %v700
      %v733 = vmul.f32 %v669, %v701
      %v734 = vmul.f32 %v670, %v702
      %v735 = vmul.f32 %v671, %v703
      %v736 = vmul.f32 %v672, %v704
      %v737 = vmul.f32 %v673, %v705
      %v738 = vmul.f32 %v674, %v706
      %v739 = vmul.f32 %v675, %v707
      %v740 = vmul.f32 %v676, %v708
      %v741 = vmul.f32 %v677, %v709
      %v742 = vmul.f32 %v678, %v710
      %v743 = vmul.f32 %v679, %v711
      %v744 = vmul.f32 %v680, %v712
      %v745 = vmul.f32 %v681, %v713
      %v746 = vmul.f32 %v682, %v714
      %v747 = vmul.f32 %v683, %v715
      %v748 = vmul.f32 %v684, %v716
      %v749 = vmul.f32 %v685, %v717
      %v750 = vmul.f32 %v686, %v718
      %v751 = vmul.f32 %v687, %v719
      %v752 = vmul.f32 %v688, %v720
      %v753 = vmul.f32 %v689, %v721
      %v754 = vmul.f32 %v690, %v722
      %v755 = vmul.f32 %v691, %v723
      %v756 = vmul.f32 %v692, %v724
      %v757 = vmul.f32 %v693, %v725
      %v758 = vmul.f32 %v694, %v726
      %v759 = vmul.f32 %v695, %v727
      %v760 = vadd.f32 %v174, %v728
      %v761 = vadd.f32 %v175, %v729
      %v762 = vadd.f32 %v176, %v730
      %v763 = vadd.f32 %v177, %v731
      %v764 = vadd.f32 %v178, %v732
      %v765 = vadd.f32 %v179, %v733
      %v766 = vadd.f32 %v180, %v734
      %v767 = vadd.f32 %v181, %v735
      %v768 = vadd.f32 %v182, %v736
      %v769 = vadd.f32 %v183, %v737
      %v770 = vadd.f32 %v184, %v738
      %v771 = vadd.f32 %v185, %v739
      %v772 = vadd.f32 %v186, %v740
      %v773 = vadd.f32 %v187, %v741
      %v774 = vadd.f32 %v188, %v742
      %v775 = vadd.f32 %v189, %v743
      %v776 = vadd.f32 %v190, %v744
      %v777 = vadd.f32 %v191, %v745
      %v778 = vadd.f32 %v192, %v746
      %v779 = vadd.f32 %v193, %v747
      %v780 = vadd.f32 %v194, %v748
      %v781 = vadd.f32 %v195, %v749
      %v782 = vadd.f32 %v196, %v750
      %v783 = vadd.f32 %v197, %v751
      %v784 = vadd.f32 %v198, %v752
      %v785 = vadd.f32 %v199, %v753
      %v786 = vadd.f32 %v200, %v754
      %v787 = vadd.f32 %v201, %v755
      %v788 = vadd.f32 %v202, %v756
      %v789 = vadd.f32 %v203, %v757
      %v790 = vadd.f32 %v204, %v758
      %v791 = vadd.f32 %v205, %v759
      %792 = vst [vmem:[%s172] sm:$0xff] %v760
      %793 = vst [vmem:[%s172 + $0x8] sm:$0xff] %v761
      %794 = vst [vmem:[%s172 + $0x10] sm:$0xff] %v762
      %795 = vst [vmem:[%s172 + $0x18] sm:$0xff] %v763
      %796 = vst [vmem:[%s172 + $0x20] sm:$0xff] %v764
      %797 = vst [vmem:[%s172 + $0x28] sm:$0xff] %v765
      %798 = vst [vmem:[%s172 + $0x30] sm:$0xff] %v766
      %799 = vst [vmem:[%s172 + $0x38] sm:$0xff] %v767
      %800 = vst [vmem:[%s172 + $0x40] sm:$0xff] %v768
      %801 = vst [vmem:[%s172 + $0x48] sm:$0xff] %v769
      %802 = vst [vmem:[%s172 + $0x50] sm:$0xff] %v770
      %803 = vst [vmem:[%s172 + $0x58] sm:$0xff] %v771
      %804 = vst [vmem:[%s172 + $0x60] sm:$0xff] %v772
      %805 = vst [vmem:[%s172 + $0x68] sm:$0xff] %v773
      %806 = vst [vmem:[%s172 + $0x70] sm:$0xff] %v774
      %807 = vst [vmem:[%s172 + $0x78] sm:$0xff] %v775
      %808 = vst [vmem:[%s172 + $0x80] sm:$0xff] %v776
      %809 = vst [vmem:[%s172 + $0x88] sm:$0xff] %v777
      %810 = vst [vmem:[%s172 + $0x90] sm:$0xff] %v778
      %811 = vst [vmem:[%s172 + $0x98] sm:$0xff] %v779
      %812 = vst [vmem:[%s172 + $0xa0] sm:$0xff] %v780
      %813 = vst [vmem:[%s172 + $0xa8] sm:$0xff] %v781
      %814 = vst [vmem:[%s172 + $0xb0] sm:$0xff] %v782
      %815 = vst [vmem:[%s172 + $0xb8] sm:$0xff] %v783
      %816 = vst [vmem:[%s172 + $0xc0] sm:$0xff] %v784
      %817 = vst [vmem:[%s172 + $0xc8] sm:$0xff] %v785
      %818 = vst [vmem:[%s172 + $0xd0] sm:$0xff] %v786
      %819 = vst [vmem:[%s172 + $0xd8] sm:$0xff] %v787
      %820 = vst [vmem:[%s172 + $0xe0] sm:$0xff] %v788
      %821 = vst [vmem:[%s172 + $0xe8] sm:$0xff] %v789
      %822 = vst [vmem:[%s172 + $0xf0] sm:$0xff] %v790
      %823 = vst [vmem:[%s172 + $0xf8] sm:$0xff] %v791
      %s824 = smul.u32 32, %s14
      %p825 = scmp.lt.s32.totalorder %s824, 63
      %s826 = scalar_select %p825, %s824, 63
      %s827 = smul.addr %s826, 8
      %s828 = scalar_lea.vmem %s3, %s827
      // Predicated region
      $region33: #{highway_forward.1} parent=31 // pred_check
        %p829 = pneg %p100
      $region34: #{highway_forward.1} parent=31 // pred_check_branch
        %831 = sbr.rel (%p829) target = $region36
      $region35: #{highway_forward.1} parent=31 // pred_region
        %s832 = smul.u32 32, %s14
      $region36: #{highway_forward.1} parent=31 // pred_fallthru
        _
    $region32: #{highway_forward.1} parent=5 // pred_fallthru
      _
    %p833 = scmp.le.s32.totalorder 2, %s9
    // Predicated region
    $region37: #{highway_forward.1} parent=5 // pred_check
      %p834 = pneg %p833
    $region38: #{highway_forward.1} parent=5 // pred_check_branch
      %836 = sbr.rel (%p834) target = $region40
    $region39: #{highway_forward.1} parent=5 // pred_region
      %s837 = ssub.s32 %s9, 2
      // Predicated region
      $region41: #{highway_forward.1} parent=39 // pred_check
        %p838 = pneg %p106
      $region42: #{highway_forward.1} parent=39 // pred_check_branch
        %840 = sbr.rel (%p838) target = $region44
      $region43: #{highway_forward.1} parent=39 // pred_region
        %s841 = smul.u32 32, %s15
        %p842 = scmp.lt.s32.totalorder %s841, 63
        %s843 = scalar_select %p842, %s841, 63
        %s844 = smul.addr %s843, 8
        %s845 = scalar_lea.vmem %s3, %s844
      $region44: #{highway_forward.1} parent=39 // pred_fallthru
        _
    $region40: #{highway_forward.1} parent=5 // pred_fallthru
      _
  $region6: #{highway_forward.1} parent=0 // loop_footer
    %s13 = sadd.s32 1, %s9
  $region7: #{highway_forward.1} parent=0 // loop_footer_branch
    %8 = sbr.rel target = $region3
  $region8: #{highway_forward.1} parent=0 // loop_exit
    _

</llo_original>
